<compile_context>
chip_gen: v5e
topology: v5e:2x2
jax: 0.10.0
libtpu: 0.0.40
codegen_flags: <defaults>
</compile_context>

<pallas_src>
import jax
import jax.numpy as jnp
from jax.experimental import pallas as pl
from jax.experimental.pallas import tpu as pltpu


# ------------------------------- kernels -----------------------------------
def _noop_alias_kernel(x_ref, o_ref):
    # Output buffer aliases the input buffer: nothing to move.  touch() keeps a
    # fake read+write dependency on the aliased output so it materializes,
    # without emitting any DMA or vector work.
    del x_ref
    pltpu.touch(o_ref)


def _copy_kernel(x_ref, o_ref):
    # Fallback path: identity copy of one lane-dense block (full-width,
    # unmasked vector stores; lowers to straight DMA + vld/vst).
    o_ref[...] = x_ref[...]


# ------------------------------- wrappers ----------------------------------
def _reshape_zero_copy(x, out_shape):
    """Zero-HBM-traffic path: aliased no-op pallas_call + metadata reshape."""
    y = pl.pallas_call(
        _noop_alias_kernel,
        out_shape=jax.ShapeDtypeStruct(x.shape, x.dtype),
        in_specs=[pl.BlockSpec(memory_space=pl.ANY)],
        out_specs=pl.BlockSpec(memory_space=pl.ANY),
        input_output_aliases={0: 0},   # output buffer == input buffer
    )(x)
    # Free, metadata-only reshape to the target NCWH shape.
    return jnp.reshape(y, out_shape)


def _reshape_tiled_copy(x, out_shape, *, tile_bytes=4 * 1024 * 1024):
    """Fallback: lane-dense tiled identity memcpy through VMEM."""
    total = x.size
    itemsize = jnp.dtype(x.dtype).itemsize

    # Largest 128-multiple lane width dividing the element count (fewer, longer
    # unmasked vector stores).
    lane = 0
    for cand in (8192, 4096, 2048, 1024, 512, 256, 128):
        if total % cand == 0:
            lane = cand
            break
    if lane == 0:
        # TODO(synk): totals not divisible by 128 use XLA's metadata-only
        # reshape (semantically identical, zero HBM traffic).
        return jnp.reshape(x, out_shape)

    rows = total // lane
    # Dtype-aware sublane alignment: 8 rows for f32, 16 for bf16, 32 for int8.
    sub = max(8, 32 // itemsize)

    # ~tile_bytes per block (4 MiB keeps the 2-in + 2-out double-buffered
    # footprint at ~16 MiB: safe inside v7x's 64 MiB VMEM and v5e's 16 MiB
    # scoped default once raised below).  cdiv grid: the last block may be
    # partial, but block size can never balloon to the whole array.
    target_rows = max(sub, tile_bytes // (lane * itemsize))
    tile_rows = min(rows, (target_rows // sub) * sub)
    grid = (pl.cdiv(rows, tile_rows),)

    x2 = jnp.reshape(x, (rows, lane))  # free, metadata-only

    flat = pl.pallas_call(
        _copy_kernel,
        out_shape=jax.ShapeDtypeStruct((rows, lane), x.dtype),
        grid=grid,
        in_specs=[pl.BlockSpec((tile_rows, lane), lambda i: (i, 0))],
        out_specs=pl.BlockSpec((tile_rows, lane), lambda i: (i, 0)),
        compiler_params=pltpu.CompilerParams(
            dimension_semantics=("parallel",),   # lets v7x split the copy
            vmem_limit_bytes=32 * 1024 * 1024,
        ),
        cost_estimate=pl.CostEstimate(
            flops=0, transcendentals=0, bytes_accessed=2 * total * itemsize
        ),
    )(x2)

    return jnp.reshape(flat, out_shape)  # free, metadata-only


def just_reshape(x):
    B, C, H, W = x.shape
    out_shape = (B, C, W, H)
    try:
        return _reshape_zero_copy(x, out_shape)
    except Exception:
        # TODO(synk): drop this fallback once the aliased no-op form is
        # guaranteed supported; it re-introduces a full read+write of x.
        return _reshape_tiled_copy(x, out_shape)


# --------------------------------- test ------------------------------------
if __name__ == "__main__":
    key = jax.random.PRNGKey(0)
    # Small, non-square spatial dims (H != W) so reshape != transpose is exercised.
    B, C, H, W = 2, 4, 16, 8
    x = jax.random.normal(key, (B, C, H, W), dtype=jnp.float32)

    # Reference (torch x.view == row-major reshape), materialized up front.
    ref = jax.block_until_ready(jnp.reshape(x, (B, C, W, H)))

    # Primary (zero-copy aliased) path.
    out = just_reshape(x)
    jax.block_until_ready(out)
    assert out.shape == (B, C, W, H), out.shape
    assert out.dtype == x.dtype
    assert jnp.array_equal(out, ref), "mismatch vs row-major reshape reference"

    # Also validate the tiled-copy fallback path explicitly.
    out_copy = _reshape_tiled_copy(x, (B, C, W, H))
    jax.block_until_ready(out_copy)
    assert jnp.array_equal(out_copy, ref), "fallback copy kernel mismatch"

    print("KERNEL_OK")
</pallas_src>

<mosaic_0001>
module attributes {stable_mosaic.version = 11 : i64} {
  func.func @_noop_alias_kernel(%arg0: memref<2x4x16x8xf32, #tpu.memory_space<any>>, %arg1: memref<2x4x16x8xf32, #tpu.memory_space<any>>) attributes {dimension_semantics = [], scalar_prefetch = 0 : i64, scratch_operands = 0 : i64, tpu.core_type = #tpu.core_type<tc>} {
    return
  }
}

module attributes {stable_mosaic.version = 11 : i64} {
  func.func @_copy_kernel(%arg0: i32, %arg1: memref<1x1024xf32, #tpu.memory_space<vmem>>, %arg2: memref<1x1024xf32, #tpu.memory_space<vmem>>) attributes {dimension_semantics = [#tpu.dimension_semantics<parallel>], iteration_bounds = array<i64: 1>, scalar_prefetch = 0 : i64, scratch_operands = 0 : i64, tpu.core_type = #tpu.core_type<tc>, window_params = [{transform_indices = @transform_0, window_bounds = array<i64: 1, 1024>}, {transform_indices = @transform_1, window_bounds = array<i64: 1, 1024>}]} {
    %c0 = arith.constant 0 : index
    %c0_0 = arith.constant 0 : index
    %0 = vector.load %arg1[%c0, %c0_0] : memref<1x1024xf32, #tpu.memory_space<vmem>>, vector<1x1024xf32>
    %c0_1 = arith.constant 0 : index
    %c0_2 = arith.constant 0 : index
    %1 = vector.load %arg2[%c0_1, %c0_2] : memref<1x1024xf32, #tpu.memory_space<vmem>>, vector<1x1024xf32>
    tpu.vector_store %arg2[%c0_1, %c0_2], %0 {strides = array<i32>} : memref<1x1024xf32, #tpu.memory_space<vmem>>, vector<1x1024xf32>,
    return
  }
  func.func @transform_0(%arg0: i32) -> (i32, i32) {
    %c0_i32 = arith.constant 0 : i32
    %c0_i32_0 = arith.constant 0 : i32
    return %arg0, %c0_i32 : i32, i32
  }
  func.func @transform_1(%arg0: i32) -> (i32, i32) {
    %c0_i32 = arith.constant 0 : i32
    %c0_i32_0 = arith.constant 0 : i32
    return %arg0, %c0_i32 : i32, i32
  }
}

</mosaic_0001>

<llo_original>
// kernel: tpu_custom_call.1
$region0: #{tpu_custom_call.1}
  #allocation0 [shape = 'u32[]', space=smem, size = 0x4, offset = 0x4, fixed_abs, tag = 'smem constant byte address 0x4 - core index']
  #allocation1 [shape = 'u32[72,128]{1,0:T(1,128)}', space=vmem, size = 0x9000, scoped, tag = 'internal scratch']
  %s0 = inlined_call_operand.vmem [shape: f32[2,4,16,8], index: 0, kind: input, shape index: {}, may-alias: {0,1}]
  %s1 = inlined_call_operand.vmem [shape: f32[2,4,16,8], index: 1, kind: output, shape index: {}, may-alias: {0,1}]
  %s2 = sld [smem:[#allocation0]]
  $region2: #{tpu_custom_call.1} parent=0
    _
  %s4 = ssub.s32 1, %s2
  %s5 = scalar_select 0, %s4, %s2

// kernel: tpu_custom_call.1
$region0: #{tpu_custom_call.1}
  #allocation0 [shape = 'u32[]', space=smem, size = 0x4, offset = 0x4, fixed_abs, tag = 'smem constant byte address 0x4 - core index']
  #allocation1 [shape = 'u32[72,128]{1,0:T(1,128)}', space=vmem, size = 0x9000, scoped, tag = 'internal scratch']
  %s0 = inlined_call_operand.hbm [shape: f32[1,1024], index: 0, kind: input, shape index: {}]
  %s1 = inlined_call_operand.hbm [shape: f32[1,1024], index: 1, kind: output, shape index: {}]
  %s2 = sld [smem:[#allocation0]]
  $region18: #{tpu_custom_call.1} parent=0
    _
  %s4 = ssub.s32 1, %s2
  %s5 = scalar_select 0, %s4, %s2
  $region1: #{tpu_custom_call.1} parent=0
    #allocation2 [shape = 'u8[4096]{0}', space=vmem, size = 0x1000, scoped, tag = 'input window, operand 0, single buffered']
    #allocation3 [shape = 's32[1]{0}', space=sflag, size = 0x4, scoped, tag = 'scoped memory for tpu_custom_call.1']
    #allocation4 [shape = 's32[1]{0}', space=sflag, size = 0x4, scoped, tag = 'scoped memory for tpu_custom_call.1']
    #allocation5 [shape = 'u8[4096]{0}', space=vmem, size = 0x1000, scoped, tag = 'output window, operand 0, single buffered']
    %6 = vsyncpa [#allocation3], 0
    %7 = vsyncpa [#allocation4], 0
    // Predicated region
    $region2: #{tpu_custom_call.1} parent=1 // pred_check
      _
    $region3: #{tpu_custom_call.1} parent=1 // pred_check_branch
      %9 = sbr.rel (0) target = $region5
    $region4: #{tpu_custom_call.1} parent=1 // pred_region
      %11 = vsyncadd [#allocation3], 0
      %s13 = sshll.u32 %s0, 4
      %s14 = int_to_ptr.hbm [resolvable:$true] %s13
      %s15 = sshll.u32 [#allocation2], 4
      %s16 = int_to_ptr.vmem [resolvable:$true] %s15
      %18 = dma.hbm_to_vmem [thread:$0]  %s14, 128, %s16, [#allocation3]
    $region5: #{tpu_custom_call.1} parent=1 // pred_fallthru
      _
    // Predicated region
    $region6: #{tpu_custom_call.1} parent=1 // pred_check
      _
    $region7: #{tpu_custom_call.1} parent=1 // pred_check_branch
      %20 = sbr.rel (0) target = $region9
    $region8: #{tpu_custom_call.1} parent=1 // pred_region
      %22 = dma.done [#allocation3], 128
    $region9: #{tpu_custom_call.1} parent=1 // pred_fallthru
      _
    %v23 = vld [vmem:[#allocation2] sm:$0xff]
    %24 = vst [vmem:[#allocation5] sm:$0xff] %v23
    // Predicated region
    $region10: #{tpu_custom_call.1} parent=1 // pred_check
      _
    $region11: #{tpu_custom_call.1} parent=1 // pred_check_branch
      %26 = sbr.rel (0) target = $region13
    $region12: #{tpu_custom_call.1} parent=1 // pred_region
      %28 = vsyncadd [#allocation4], 0
      %s30 = sshll.u32 [#allocation5], 4
      %s31 = int_to_ptr.vmem [resolvable:$true] %s30
      %s32 = sshll.u32 %s1, 4
      %s33 = int_to_ptr.hbm [resolvable:$true] %s32
      %35 = dma.vmem_to_hbm [thread:$0]  %s31, 128, %s33, [#allocation4]
    $region13: #{tpu_custom_call.1} parent=1 // pred_fallthru
      _
    // Predicated region
    $region14: #{tpu_custom_call.1} parent=1 // pred_check
      _
    $region15: #{tpu_custom_call.1} parent=1 // pred_check_branch
      %37 = sbr.rel (0) target = $region17
    $region16: #{tpu_custom_call.1} parent=1 // pred_region
      %39 = dma.done [#allocation4], 128
    $region17: #{tpu_custom_call.1} parent=1 // pred_fallthru
      _
    %40 = vsyncpa [#allocation3], 1
    %41 = vsyncpa [#allocation4], 1

</llo_original>
